<compile_context>
chip_gen: v7x
topology: tpu7x:2x2x1
jax: 0.10.0
libtpu: 0.0.40
codegen_flags: <defaults>
</compile_context>

<pallas_src>
import functools

import numpy as np
import jax
import jax.numpy as jnp
from jax.experimental import pallas as pl
from jax.experimental.pallas import tpu as pltpu


def make_kernel_np(k):
    """NumPy mirror of stylegan2 make_kernel (static, trace-time)."""
    k = np.asarray(k, dtype=np.float32)
    if k.ndim == 1:
        k = np.outer(k, k)
    k = k / k.sum()
    return k


def _largest_divisor_leq(n, cap):
    cap = max(1, min(n, int(cap)))
    for d in range(cap, 0, -1):
        if n % d == 0:
            return d
    return 1


def _upfirdn2d_up_kernel(x_ref, o_ref, *, taps, h_out, w_out):
    """One grid step: a block of Bt independent (image, channel) planes.

    x_ref: (Bt, Hp, Wz)       x-zero-inserted, zero-padded input planes
    o_ref: (Bt, h_out, u*w_out)  output rows, y-phases packed along lanes
    taps:  tuple over y-phases of tuples of (row_off, col_off, weight)
           (static Python data -> unrolled straight-line VPU code)
    """
    rows = []
    for phase_taps in taps:                       # static unroll over y-phases
        acc = None
        for (dy, dx, w) in phase_taps:            # static unroll over taps
            v = x_ref[:, pl.ds(dy, h_out), pl.ds(dx, w_out)]
            v = v.astype(jnp.float32) * w         # f32 accumulate on the VPU
            acc = v if acc is None else acc + v
        rows.append(acc)
    # Pack phases along lanes -> one dense, lane-contiguous store of the block.
    o_ref[...] = jnp.concatenate(rows, axis=-1).astype(o_ref.dtype)


def upsample(x, kernel=(1, 3, 3, 1), factor=2, *, block_target_bytes=2 << 20):
    """Pallas implementation of stylegan2 Upsample.forward (NCHW input)."""
    N, C, H, W = x.shape
    u = int(factor)
    k2d = make_kernel_np(kernel) * (u ** 2)
    K = k2d.shape[0]
    assert k2d.shape == (K, K), "blur kernel must be square"
    p = K - u
    assert p >= 0, "kernel smaller than the upsample factor is unsupported"
    pad0 = (p + 1) // 2 + u - 1
    pad1 = p // 2
    assert pad0 >= 0 and pad1 >= 0

    # upfirdn2d convolves with k, i.e. cross-correlates with flip(k).
    wf = k2d[::-1, ::-1]

    # ---- static polyphase decomposition along y ---------------------------
    # Output row oy = u*h + phi only uses kernel rows i ≡ (pad0 - phi) (mod u);
    # the m-th such row reads input row h + m + s_phi with
    # s_phi = (phi + i0 - pad0) // u (exact, possibly negative).
    i0s, ss, ns = [], [], []
    for phi in range(u):
        i0 = (pad0 - phi) % u
        i0s.append(i0)
        ns.append(len(range(i0, K, u)))
        ss.append((phi + i0 - pad0) // u)
    ypad_before = max(0, -min(ss))
    ymax_off = max(ns[phi] - 1 + ss[phi] for phi in range(u))
    Hp = ypad_before + H + max(0, ymax_off)
    ypad_after = Hp - ypad_before - H

    taps = []
    for phi in range(u):
        tl = []
        for m, iy in enumerate(range(i0s[phi], K, u)):
            dy = ypad_before + m + ss[phi]
            for j in range(K):
                wgt = float(wf[iy, j])
                if wgt != 0.0:
                    tl.append((dy, j, wgt))
        taps.append(tuple(tl))
    taps = tuple(taps)

    # ---- wrapper-side x zero-insertion + zero padding (one small pass) ----
    B = N * C                  # blur is depthwise: fuse batch and channels
    Wo = u * W                 # output width (per y-phase row width)
    Ho = u * H
    Wz = u * W + K - 1         # padded, x-zero-inserted row width
    xb = x.reshape(B, H, W)
    xz = jnp.pad(xb[..., None], ((0, 0), (0, 0), (0, 0), (0, u - 1)))
    xz = xz.reshape(B, H, u * W)
    xz = jnp.pad(xz, ((0, 0), (ypad_before, ypad_after), (pad0, K - 1 - pad0)))
    assert xz.shape == (B, Hp, Wz)

    # ---- block the fused N*C axis to a few MiB per grid step --------------
    itemsize = x.dtype.itemsize
    bytes_per_plane = (Hp * Wz + H * u * Wo) * itemsize
    bt = _largest_divisor_leq(B, block_target_bytes // max(1, bytes_per_plane))
    grid = (B // bt,)

    flops = 2 * B * H * Wo * sum(len(t) for t in taps)
    bytes_accessed = (B * Hp * Wz + B * H * u * Wo) * itemsize

    kern = functools.partial(_upfirdn2d_up_kernel, taps=taps, h_out=H, w_out=Wo)

    out = pl.pallas_call(
        kern,
        out_shape=jax.ShapeDtypeStruct((B, H, u * Wo), x.dtype),
        grid=grid,
        in_specs=[pl.BlockSpec((bt, Hp, Wz), lambda i: (i, 0, 0))],
        out_specs=pl.BlockSpec((bt, H, u * Wo), lambda i: (i, 0, 0)),
        compiler_params=pltpu.CompilerParams(
            dimension_semantics=("parallel",)),
        cost_estimate=pl.CostEstimate(
            flops=flops, transcendentals=0, bytes_accessed=bytes_accessed),
    )(xz)

    # Rows are [phase0 | phase1 | ...] along lanes, which is exactly the
    # row-major layout of (B, u*H, u*W): free reshape, no transpose.
    return out.reshape(N, C, Ho, Wo)


# ---------------------------- pure-JAX reference ---------------------------
def upfirdn2d_ref(x, k2d, up, pad):
    """Reference upfirdn2d (up only, down=1), NCHW, mirrors the torch native path."""
    N, C, H, W = x.shape
    K = k2d.shape[0]
    p0, p1 = pad
    z = jnp.zeros((N, C, H, up, W, up), jnp.float32)
    z = z.at[:, :, :, 0, :, 0].set(x.astype(jnp.float32))
    z = z.reshape(N, C, H * up, W * up)
    z = jnp.pad(z, ((0, 0), (0, 0), (p0, p1), (p0, p1)))
    Ho = H * up + p0 + p1 - K + 1
    Wo = W * up + p0 + p1 - K + 1
    wf = jnp.flip(jnp.asarray(k2d, jnp.float32), (0, 1))
    out = jnp.zeros((N, C, Ho, Wo), jnp.float32)
    for i in range(K):
        for j in range(K):
            out = out + wf[i, j] * z[:, :, i:i + Ho, j:j + Wo]
    return out.astype(x.dtype)


def upsample_ref(x, kernel=(1, 3, 3, 1), factor=2):
    k2d = make_kernel_np(kernel) * (factor ** 2)
    K = k2d.shape[0]
    p = K - factor
    pad = ((p + 1) // 2 + factor - 1, p // 2)
    return upfirdn2d_ref(x, k2d, up=factor, pad=pad)


if __name__ == "__main__":
    key = jax.random.PRNGKey(0)
    x = jax.random.normal(key, (2, 4, 16, 16), jnp.float32)

    for blur in ((1, 3, 3, 1), (1, 2, 1)):
        out = upsample(x, kernel=blur, factor=2)
        out = jax.block_until_ready(out)
        ref = upsample_ref(x, kernel=blur, factor=2)
        assert out.shape == (2, 4, 32, 32), out.shape
        err = float(jnp.max(jnp.abs(out - ref)))
        assert jnp.allclose(out, ref, atol=1e-4, rtol=1e-4), err

    # Also exercise the multi-step (pipelined) grid path with a tiny block
    # budget, to make sure batch blocking is correct.
    out_small_blocks = upsample(x, kernel=(1, 3, 3, 1), factor=2,
                                block_target_bytes=16 * 1024)
    out_small_blocks = jax.block_until_ready(out_small_blocks)
    ref = upsample_ref(x, kernel=(1, 3, 3, 1), factor=2)
    assert jnp.allclose(out_small_blocks, ref, atol=1e-4, rtol=1e-4)

    print("KERNEL_OK")
</pallas_src>

<mosaic_0001>
module attributes {stable_mosaic.version = 11 : i64} {
  func.func @_upfirdn2d_up_kernel(%arg0: i32, %arg1: memref<8x18x35xf32, #tpu.memory_space<vmem>>, %arg2: memref<8x16x64xf32, #tpu.memory_space<vmem>>) attributes {dimension_semantics = [#tpu.dimension_semantics<parallel>], iteration_bounds = array<i64: 1>, scalar_prefetch = 0 : i64, scratch_operands = 0 : i64, tpu.core_type = #tpu.core_type<tc>, window_params = [{transform_indices = @transform_0, window_bounds = array<i64: 8, 18, 35>}, {transform_indices = @transform_1, window_bounds = array<i64: 8, 16, 64>}]} {
    %c0 = arith.constant 0 : index
    %c0_0 = arith.constant 0 : index
    %c0_1 = arith.constant 0 : index
    %0 = vector.load %arg1[%c0, %c0_0, %c0_1] : memref<8x18x35xf32, #tpu.memory_space<vmem>>, vector<8x16x32xf32>
    %cst = arith.constant 6.250000e-02 : f32
    %1 = vector.broadcast %cst : f32 to vector<8x16x32xf32>
    %2 = arith.mulf %0, %1 : vector<8x16x32xf32>
    %c0_2 = arith.constant 0 : index
    %c0_3 = arith.constant 0 : index
    %c1 = arith.constant 1 : index
    %3 = vector.load %arg1[%c0_2, %c0_3, %c1] : memref<8x18x35xf32, #tpu.memory_space<vmem>>, vector<8x16x32xf32>
    %cst_4 = arith.constant 1.875000e-01 : f32
    %4 = vector.broadcast %cst_4 : f32 to vector<8x16x32xf32>
    %5 = arith.mulf %3, %4 : vector<8x16x32xf32>
    %6 = arith.addf %2, %5 : vector<8x16x32xf32>
    %c0_5 = arith.constant 0 : index
    %c0_6 = arith.constant 0 : index
    %c2 = arith.constant 2 : index
    %7 = vector.load %arg1[%c0_5, %c0_6, %c2] : memref<8x18x35xf32, #tpu.memory_space<vmem>>, vector<8x16x32xf32>
    %cst_7 = arith.constant 1.875000e-01 : f32
    %8 = vector.broadcast %cst_7 : f32 to vector<8x16x32xf32>
    %9 = arith.mulf %7, %8 : vector<8x16x32xf32>
    %10 = arith.addf %6, %9 : vector<8x16x32xf32>
    %c0_8 = arith.constant 0 : index
    %c0_9 = arith.constant 0 : index
    %c3 = arith.constant 3 : index
    %11 = vector.load %arg1[%c0_8, %c0_9, %c3] : memref<8x18x35xf32, #tpu.memory_space<vmem>>, vector<8x16x32xf32>
    %cst_10 = arith.constant 6.250000e-02 : f32
    %12 = vector.broadcast %cst_10 : f32 to vector<8x16x32xf32>
    %13 = arith.mulf %11, %12 : vector<8x16x32xf32>
    %14 = arith.addf %10, %13 : vector<8x16x32xf32>
    %c0_11 = arith.constant 0 : index
    %c1_12 = arith.constant 1 : index
    %c0_13 = arith.constant 0 : index
    %15 = vector.load %arg1[%c0_11, %c1_12, %c0_13] : memref<8x18x35xf32, #tpu.memory_space<vmem>>, vector<8x16x32xf32>
    %cst_14 = arith.constant 1.875000e-01 : f32
    %16 = vector.broadcast %cst_14 : f32 to vector<8x16x32xf32>
    %17 = arith.mulf %15, %16 : vector<8x16x32xf32>
    %18 = arith.addf %14, %17 : vector<8x16x32xf32>
    %c0_15 = arith.constant 0 : index
    %c1_16 = arith.constant 1 : index
    %c1_17 = arith.constant 1 : index
    %19 = vector.load %arg1[%c0_15, %c1_16, %c1_17] : memref<8x18x35xf32, #tpu.memory_space<vmem>>, vector<8x16x32xf32>
    %cst_18 = arith.constant 5.625000e-01 : f32
    %20 = vector.broadcast %cst_18 : f32 to vector<8x16x32xf32>
    %21 = arith.mulf %19, %20 : vector<8x16x32xf32>
    %22 = arith.addf %18, %21 : vector<8x16x32xf32>
    %c0_19 = arith.constant 0 : index
    %c1_20 = arith.constant 1 : index
    %c2_21 = arith.constant 2 : index
    %23 = vector.load %arg1[%c0_19, %c1_20, %c2_21] : memref<8x18x35xf32, #tpu.memory_space<vmem>>, vector<8x16x32xf32>
    %cst_22 = arith.constant 5.625000e-01 : f32
    %24 = vector.broadcast %cst_22 : f32 to vector<8x16x32xf32>
    %25 = arith.mulf %23, %24 : vector<8x16x32xf32>
    %26 = arith.addf %22, %25 : vector<8x16x32xf32>
    %c0_23 = arith.constant 0 : index
    %c1_24 = arith.constant 1 : index
    %c3_25 = arith.constant 3 : index
    %27 = vector.load %arg1[%c0_23, %c1_24, %c3_25] : memref<8x18x35xf32, #tpu.memory_space<vmem>>, vector<8x16x32xf32>
    %cst_26 = arith.constant 1.875000e-01 : f32
    %28 = vector.broadcast %cst_26 : f32 to vector<8x16x32xf32>
    %29 = arith.mulf %27, %28 : vector<8x16x32xf32>
    %30 = arith.addf %26, %29 : vector<8x16x32xf32>
    %c0_27 = arith.constant 0 : index
    %c1_28 = arith.constant 1 : index
    %c0_29 = arith.constant 0 : index
    %31 = vector.load %arg1[%c0_27, %c1_28, %c0_29] : memref<8x18x35xf32, #tpu.memory_space<vmem>>, vector<8x16x32xf32>
    %cst_30 = arith.constant 1.875000e-01 : f32
    %32 = vector.broadcast %cst_30 : f32 to vector<8x16x32xf32>
    %33 = arith.mulf %31, %32 : vector<8x16x32xf32>
    %c0_31 = arith.constant 0 : index
    %c1_32 = arith.constant 1 : index
    %c1_33 = arith.constant 1 : index
    %34 = vector.load %arg1[%c0_31, %c1_32, %c1_33] : memref<8x18x35xf32, #tpu.memory_space<vmem>>, vector<8x16x32xf32>
    %cst_34 = arith.constant 5.625000e-01 : f32
    %35 = vector.broadcast %cst_34 : f32 to vector<8x16x32xf32>
    %36 = arith.mulf %34, %35 : vector<8x16x32xf32>
    %37 = arith.addf %33, %36 : vector<8x16x32xf32>
    %c0_35 = arith.constant 0 : index
    %c1_36 = arith.constant 1 : index
    %c2_37 = arith.constant 2 : index
    %38 = vector.load %arg1[%c0_35, %c1_36, %c2_37] : memref<8x18x35xf32, #tpu.memory_space<vmem>>, vector<8x16x32xf32>
    %cst_38 = arith.constant 5.625000e-01 : f32
    %39 = vector.broadcast %cst_38 : f32 to vector<8x16x32xf32>
    %40 = arith.mulf %38, %39 : vector<8x16x32xf32>
    %41 = arith.addf %37, %40 : vector<8x16x32xf32>
    %c0_39 = arith.constant 0 : index
    %c1_40 = arith.constant 1 : index
    %c3_41 = arith.constant 3 : index
    %42 = vector.load %arg1[%c0_39, %c1_40, %c3_41] : memref<8x18x35xf32, #tpu.memory_space<vmem>>, vector<8x16x32xf32>
    %cst_42 = arith.constant 1.875000e-01 : f32
    %43 = vector.broadcast %cst_42 : f32 to vector<8x16x32xf32>
    %44 = arith.mulf %42, %43 : vector<8x16x32xf32>
    %45 = arith.addf %41, %44 : vector<8x16x32xf32>
    %c0_43 = arith.constant 0 : index
    %c2_44 = arith.constant 2 : index
    %c0_45 = arith.constant 0 : index
    %46 = vector.load %arg1[%c0_43, %c2_44, %c0_45] : memref<8x18x35xf32, #tpu.memory_space<vmem>>, vector<8x16x32xf32>
    %cst_46 = arith.constant 6.250000e-02 : f32
    %47 = vector.broadcast %cst_46 : f32 to vector<8x16x32xf32>
    %48 = arith.mulf %46, %47 : vector<8x16x32xf32>
    %49 = arith.addf %45, %48 : vector<8x16x32xf32>
    %c0_47 = arith.constant 0 : index
    %c2_48 = arith.constant 2 : index
    %c1_49 = arith.constant 1 : index
    %50 = vector.load %arg1[%c0_47, %c2_48, %c1_49] : memref<8x18x35xf32, #tpu.memory_space<vmem>>, vector<8x16x32xf32>
    %cst_50 = arith.constant 1.875000e-01 : f32
    %51 = vector.broadcast %cst_50 : f32 to vector<8x16x32xf32>
    %52 = arith.mulf %50, %51 : vector<8x16x32xf32>
    %53 = arith.addf %49, %52 : vector<8x16x32xf32>
    %c0_51 = arith.constant 0 : index
    %c2_52 = arith.constant 2 : index
    %c2_53 = arith.constant 2 : index
    %54 = vector.load %arg1[%c0_51, %c2_52, %c2_53] : memref<8x18x35xf32, #tpu.memory_space<vmem>>, vector<8x16x32xf32>
    %cst_54 = arith.constant 1.875000e-01 : f32
    %55 = vector.broadcast %cst_54 : f32 to vector<8x16x32xf32>
    %56 = arith.mulf %54, %55 : vector<8x16x32xf32>
    %57 = arith.addf %53, %56 : vector<8x16x32xf32>
    %c0_55 = arith.constant 0 : index
    %c2_56 = arith.constant 2 : index
    %c3_57 = arith.constant 3 : index
    %58 = vector.load %arg1[%c0_55, %c2_56, %c3_57] : memref<8x18x35xf32, #tpu.memory_space<vmem>>, vector<8x16x32xf32>
    %cst_58 = arith.constant 6.250000e-02 : f32
    %59 = vector.broadcast %cst_58 : f32 to vector<8x16x32xf32>
    %60 = arith.mulf %58, %59 : vector<8x16x32xf32>
    %61 = arith.addf %57, %60 : vector<8x16x32xf32>
    %62 = tpu.concatenate %30, %61 in 2 : vector<8x16x32xf32>, vector<8x16x32xf32> -> vector<8x16x64xf32>
    %c0_59 = arith.constant 0 : index
    %c0_60 = arith.constant 0 : index
    %c0_61 = arith.constant 0 : index
    %63 = vector.load %arg2[%c0_59, %c0_60, %c0_61] : memref<8x16x64xf32, #tpu.memory_space<vmem>>, vector<8x16x64xf32>
    tpu.vector_store %arg2[%c0_59, %c0_60, %c0_61], %62 {strides = array<i32>} : memref<8x16x64xf32, #tpu.memory_space<vmem>>, vector<8x16x64xf32>,
    return
  }
  func.func @transform_0(%arg0: i32) -> (i32, i32, i32) {
    %c0_i32 = arith.constant 0 : i32
    %c0_i32_0 = arith.constant 0 : i32
    %c0_i32_1 = arith.constant 0 : i32
    return %arg0, %c0_i32, %c0_i32_0 : i32, i32, i32
  }
  func.func @transform_1(%arg0: i32) -> (i32, i32, i32) {
    %c0_i32 = arith.constant 0 : i32
    %c0_i32_0 = arith.constant 0 : i32
    %c0_i32_1 = arith.constant 0 : i32
    return %arg0, %c0_i32, %c0_i32_0 : i32, i32, i32
  }
}

</mosaic_0001>

<llo_original>
// kernel: tpu_custom_call.1
$region0: #{tpu_custom_call.1}
  #allocation0 [shape = 'u32[]', space=smem, size = 0x4, offset = 0x4, fixed_abs, tag = 'smem constant byte address 0x4 - core index']
  #allocation1 [shape = 'u32[144,128]{1,0:T(1,128)}', space=vmem, size = 0x12000, scoped, tag = 'internal scratch']
  %s0 = inlined_call_operand.vmem [shape: f32[8,18,35], index: 0, kind: input, shape index: {}]
  %s1 = inlined_call_operand.hbm [shape: f32[8,16,64], index: 1, kind: output, shape index: {}]
  %s2 = sld [smem:[#allocation0]]
  $region14: #{tpu_custom_call.1} parent=0
    _
  %s4 = ssub.s32 1, %s2
  %s5 = scalar_select 0, %s4, %s2
  $region1: #{tpu_custom_call.1} parent=0
    #allocation2 [shape = 'u8[65536]{0}', space=vmem, size = 0x10000, scoped, tag = 'output window, operand 0, single buffered']
    #allocation3 [shape = 's32[1]{0}', space=sflag, size = 0x4, scoped, tag = 'scoped memory for tpu_custom_call.1']
    %6 = vsyncpa [#allocation3], 0
    // Predicated region
    $region2: #{tpu_custom_call.1} parent=1 // pred_check
      _
    $region3: #{tpu_custom_call.1} parent=1 // pred_check_branch
      %8 = sbr.rel (0) target = $region5
    $region4: #{tpu_custom_call.1} parent=1 // pred_region
      _
    $region5: #{tpu_custom_call.1} parent=1 // pred_fallthru
      _
    %v9 = vld [vmem:[%s0] sm:$0xff]
    %v10 = vld [vmem:[%s0 + $0x8] sm:$0xff]
    %v11 = vld [vmem:[%s0 + $0x18] sm:$0xff]
    %v12 = vld [vmem:[%s0 + $0x20] sm:$0xff]
    %v13 = vld [vmem:[%s0 + $0x30] sm:$0xff]
    %v14 = vld [vmem:[%s0 + $0x38] sm:$0xff]
    %v15 = vld [vmem:[%s0 + $0x48] sm:$0xff]
    %v16 = vld [vmem:[%s0 + $0x50] sm:$0xff]
    %v17 = vld [vmem:[%s0 + $0x60] sm:$0xff]
    %v18 = vld [vmem:[%s0 + $0x68] sm:$0xff]
    %v19 = vld [vmem:[%s0 + $0x78] sm:$0xff]
    %v20 = vld [vmem:[%s0 + $0x80] sm:$0xff]
    %v21 = vld [vmem:[%s0 + $0x90] sm:$0xff]
    %v22 = vld [vmem:[%s0 + $0x98] sm:$0xff]
    %v23 = vld [vmem:[%s0 + $0xa8] sm:$0xff]
    %v24 = vld [vmem:[%s0 + $0xb0] sm:$0xff]
    %v25 = vmul.f32 %v9, 0.0625
    %v26 = vmul.f32 %v10, 0.0625
    %v27 = vmul.f32 %v11, 0.0625
    %v28 = vmul.f32 %v12, 0.0625
    %v29 = vmul.f32 %v13, 0.0625
    %v30 = vmul.f32 %v14, 0.0625
    %v31 = vmul.f32 %v15, 0.0625
    %v32 = vmul.f32 %v16, 0.0625
    %v33 = vmul.f32 %v17, 0.0625
    %v34 = vmul.f32 %v18, 0.0625
    %v35 = vmul.f32 %v19, 0.0625
    %v36 = vmul.f32 %v20, 0.0625
    %v37 = vmul.f32 %v21, 0.0625
    %v38 = vmul.f32 %v22, 0.0625
    %v39 = vmul.f32 %v23, 0.0625
    %v40 = vmul.f32 %v24, 0.0625
    %v41 = vmul.f32 %v9, 0.1875
    %v42 = vmul.f32 %v10, 0.1875
    %v43 = vmul.f32 %v11, 0.1875
    %v44 = vmul.f32 %v12, 0.1875
    %v45 = vmul.f32 %v13, 0.1875
    %v46 = vmul.f32 %v14, 0.1875
    %v47 = vmul.f32 %v15, 0.1875
    %v48 = vmul.f32 %v16, 0.1875
    %v49 = vmul.f32 %v17, 0.1875
    %v50 = vmul.f32 %v18, 0.1875
    %v51 = vmul.f32 %v19, 0.1875
    %v52 = vmul.f32 %v20, 0.1875
    %v53 = vmul.f32 %v21, 0.1875
    %v54 = vmul.f32 %v22, 0.1875
    %v55 = vmul.f32 %v23, 0.1875
    %v56 = vmul.f32 %v24, 0.1875
    %73 = vrot.lane.b32.xlu0 %v41, 127
    %v74 = vpop.permute.xlu0 %73
    %75 = vrot.lane.b32.xlu0 %v42, 127
    %v76 = vpop.permute.xlu0 %75
    %77 = vrot.lane.b32.xlu0 %v43, 127
    %v78 = vpop.permute.xlu0 %77
    %79 = vrot.lane.b32.xlu0 %v44, 127
    %v80 = vpop.permute.xlu0 %79
    %81 = vrot.lane.b32.xlu0 %v45, 127
    %v82 = vpop.permute.xlu0 %81
    %83 = vrot.lane.b32.xlu0 %v46, 127
    %v84 = vpop.permute.xlu0 %83
    %85 = vrot.lane.b32.xlu0 %v47, 127
    %v86 = vpop.permute.xlu0 %85
    %87 = vrot.lane.b32.xlu0 %v48, 127
    %v88 = vpop.permute.xlu0 %87
    %89 = vrot.lane.b32.xlu0 %v49, 127
    %v90 = vpop.permute.xlu0 %89
    %91 = vrot.lane.b32.xlu0 %v50, 127
    %v92 = vpop.permute.xlu0 %91
    %93 = vrot.lane.b32.xlu0 %v51, 127
    %v94 = vpop.permute.xlu0 %93
    %95 = vrot.lane.b32.xlu0 %v52, 127
    %v96 = vpop.permute.xlu0 %95
    %97 = vrot.lane.b32.xlu0 %v53, 127
    %v98 = vpop.permute.xlu0 %97
    %99 = vrot.lane.b32.xlu0 %v54, 127
    %v100 = vpop.permute.xlu0 %99
    %101 = vrot.lane.b32.xlu0 %v55, 127
    %v102 = vpop.permute.xlu0 %101
    %103 = vrot.lane.b32.xlu0 %v56, 127
    %v104 = vpop.permute.xlu0 %103
    %v121 = vadd.f32 %v25, %v74
    %v122 = vadd.f32 %v26, %v76
    %v123 = vadd.f32 %v27, %v78
    %v124 = vadd.f32 %v28, %v80
    %v125 = vadd.f32 %v29, %v82
    %v126 = vadd.f32 %v30, %v84
    %v127 = vadd.f32 %v31, %v86
    %v128 = vadd.f32 %v32, %v88
    %v129 = vadd.f32 %v33, %v90
    %v130 = vadd.f32 %v34, %v92
    %v131 = vadd.f32 %v35, %v94
    %v132 = vadd.f32 %v36, %v96
    %v133 = vadd.f32 %v37, %v98
    %v134 = vadd.f32 %v38, %v100
    %v135 = vadd.f32 %v39, %v102
    %v136 = vadd.f32 %v40, %v104
    %137 = vrot.lane.b32.xlu0 %v41, 126
    %v138 = vpop.permute.xlu0 %137
    %139 = vrot.lane.b32.xlu0 %v42, 126
    %v140 = vpop.permute.xlu0 %139
    %141 = vrot.lane.b32.xlu0 %v43, 126
    %v142 = vpop.permute.xlu0 %141
    %143 = vrot.lane.b32.xlu0 %v44, 126
    %v144 = vpop.permute.xlu0 %143
    %145 = vrot.lane.b32.xlu0 %v45, 126
    %v146 = vpop.permute.xlu0 %145
    %147 = vrot.lane.b32.xlu0 %v46, 126
    %v148 = vpop.permute.xlu0 %147
    %149 = vrot.lane.b32.xlu0 %v47, 126
    %v150 = vpop.permute.xlu0 %149
    %151 = vrot.lane.b32.xlu0 %v48, 126
    %v152 = vpop.permute.xlu0 %151
    %153 = vrot.lane.b32.xlu0 %v49, 126
    %v154 = vpop.permute.xlu0 %153
    %155 = vrot.lane.b32.xlu0 %v50, 126
    %v156 = vpop.permute.xlu0 %155
    %157 = vrot.lane.b32.xlu0 %v51, 126
    %v158 = vpop.permute.xlu0 %157
    %159 = vrot.lane.b32.xlu0 %v52, 126
    %v160 = vpop.permute.xlu0 %159
    %161 = vrot.lane.b32.xlu0 %v53, 126
    %v162 = vpop.permute.xlu0 %161
    %163 = vrot.lane.b32.xlu0 %v54, 126
    %v164 = vpop.permute.xlu0 %163
    %165 = vrot.lane.b32.xlu0 %v55, 126
    %v166 = vpop.permute.xlu0 %165
    %167 = vrot.lane.b32.xlu0 %v56, 126
    %v168 = vpop.permute.xlu0 %167
    %v185 = vadd.f32 %v121, %v138
    %v186 = vadd.f32 %v122, %v140
    %v187 = vadd.f32 %v123, %v142
    %v188 = vadd.f32 %v124, %v144
    %v189 = vadd.f32 %v125, %v146
    %v190 = vadd.f32 %v126, %v148
    %v191 = vadd.f32 %v127, %v150
    %v192 = vadd.f32 %v128, %v152
    %v193 = vadd.f32 %v129, %v154
    %v194 = vadd.f32 %v130, %v156
    %v195 = vadd.f32 %v131, %v158
    %v196 = vadd.f32 %v132, %v160
    %v197 = vadd.f32 %v133, %v162
    %v198 = vadd.f32 %v134, %v164
    %v199 = vadd.f32 %v135, %v166
    %v200 = vadd.f32 %v136, %v168
    %217 = vrot.lane.b32.xlu0 %v25, 125
    %v218 = vpop.permute.xlu0 %217
    %219 = vrot.lane.b32.xlu0 %v26, 125
    %v220 = vpop.permute.xlu0 %219
    %221 = vrot.lane.b32.xlu0 %v27, 125
    %v222 = vpop.permute.xlu0 %221
    %223 = vrot.lane.b32.xlu0 %v28, 125
    %v224 = vpop.permute.xlu0 %223
    %225 = vrot.lane.b32.xlu0 %v29, 125
    %v226 = vpop.permute.xlu0 %225
    %227 = vrot.lane.b32.xlu0 %v30, 125
    %v228 = vpop.permute.xlu0 %227
    %229 = vrot.lane.b32.xlu0 %v31, 125
    %v230 = vpop.permute.xlu0 %229
    %231 = vrot.lane.b32.xlu0 %v32, 125
    %v232 = vpop.permute.xlu0 %231
    %233 = vrot.lane.b32.xlu0 %v33, 125
    %v234 = vpop.permute.xlu0 %233
    %235 = vrot.lane.b32.xlu0 %v34, 125
    %v236 = vpop.permute.xlu0 %235
    %237 = vrot.lane.b32.xlu0 %v35, 125
    %v238 = vpop.permute.xlu0 %237
    %239 = vrot.lane.b32.xlu0 %v36, 125
    %v240 = vpop.permute.xlu0 %239
    %241 = vrot.lane.b32.xlu0 %v37, 125
    %v242 = vpop.permute.xlu0 %241
    %243 = vrot.lane.b32.xlu0 %v38, 125
    %v244 = vpop.permute.xlu0 %243
    %245 = vrot.lane.b32.xlu0 %v39, 125
    %v246 = vpop.permute.xlu0 %245
    %247 = vrot.lane.b32.xlu0 %v40, 125
    %v248 = vpop.permute.xlu0 %247
    %v265 = vadd.f32 %v185, %v218
    %v266 = vadd.f32 %v186, %v220
    %v267 = vadd.f32 %v187, %v222
    %v268 = vadd.f32 %v188, %v224
    %v269 = vadd.f32 %v189, %v226
    %v270 = vadd.f32 %v190, %v228
    %v271 = vadd.f32 %v191, %v230
    %v272 = vadd.f32 %v192, %v232
    %v273 = vadd.f32 %v193, %v234
    %v274 = vadd.f32 %v194, %v236
    %v275 = vadd.f32 %v195, %v238
    %v276 = vadd.f32 %v196, %v240
    %v277 = vadd.f32 %v197, %v242
    %v278 = vadd.f32 %v198, %v244
    %v279 = vadd.f32 %v199, %v246
    %v280 = vadd.f32 %v200, %v248
    %v281 = vld [vmem:[%s0 + $0x1] sm:$0xff]
    %v282 = vld [vmem:[%s0 + $0x9] sm:$0xff]
    %v283 = vld [vmem:[%s0 + $0x19] sm:$0xff]
    %v284 = vld [vmem:[%s0 + $0x21] sm:$0xff]
    %v285 = vld [vmem:[%s0 + $0x31] sm:$0xff]
    %v286 = vld [vmem:[%s0 + $0x39] sm:$0xff]
    %v287 = vld [vmem:[%s0 + $0x49] sm:$0xff]
    %v288 = vld [vmem:[%s0 + $0x51] sm:$0xff]
    %v289 = vld [vmem:[%s0 + $0x61] sm:$0xff]
    %v290 = vld [vmem:[%s0 + $0x69] sm:$0xff]
    %v291 = vld [vmem:[%s0 + $0x79] sm:$0xff]
    %v292 = vld [vmem:[%s0 + $0x81] sm:$0xff]
    %v293 = vld [vmem:[%s0 + $0x91] sm:$0xff]
    %v294 = vld [vmem:[%s0 + $0x99] sm:$0xff]
    %v295 = vld [vmem:[%s0 + $0xa9] sm:$0xff]
    %v296 = vld [vmem:[%s0 + $0xb1] sm:$0xff]
    %v297 = vmul.f32 %v281, 0.1875
    %v298 = vmul.f32 %v282, 0.1875
    %v299 = vmul.f32 %v283, 0.1875
    %v300 = vmul.f32 %v284, 0.1875
    %v301 = vmul.f32 %v285, 0.1875
    %v302 = vmul.f32 %v286, 0.1875
    %v303 = vmul.f32 %v287, 0.1875
    %v304 = vmul.f32 %v288, 0.1875
    %v305 = vmul.f32 %v289, 0.1875
    %v306 = vmul.f32 %v290, 0.1875
    %v307 = vmul.f32 %v291, 0.1875
    %v308 = vmul.f32 %v292, 0.1875
    %v309 = vmul.f32 %v293, 0.1875
    %v310 = vmul.f32 %v294, 0.1875
    %v311 = vmul.f32 %v295, 0.1875
    %v312 = vmul.f32 %v296, 0.1875
    %v313 = vadd.f32 %v265, %v297
    %v314 = vadd.f32 %v266, %v298
    %v315 = vadd.f32 %v267, %v299
    %v316 = vadd.f32 %v268, %v300
    %v317 = vadd.f32 %v269, %v301
    %v318 = vadd.f32 %v270, %v302
    %v319 = vadd.f32 %v271, %v303
    %v320 = vadd.f32 %v272, %v304
    %v321 = vadd.f32 %v273, %v305
    %v322 = vadd.f32 %v274, %v306
    %v323 = vadd.f32 %v275, %v307
    %v324 = vadd.f32 %v276, %v308
    %v325 = vadd.f32 %v277, %v309
    %v326 = vadd.f32 %v278, %v310
    %v327 = vadd.f32 %v279, %v311
    %v328 = vadd.f32 %v280, %v312
    %v329 = vmul.f32 %v281, 0.5625
    %v330 = vmul.f32 %v282, 0.5625
    %v331 = vmul.f32 %v283, 0.5625
    %v332 = vmul.f32 %v284, 0.5625
    %v333 = vmul.f32 %v285, 0.5625
    %v334 = vmul.f32 %v286, 0.5625
    %v335 = vmul.f32 %v287, 0.5625
    %v336 = vmul.f32 %v288, 0.5625
    %v337 = vmul.f32 %v289, 0.5625
    %v338 = vmul.f32 %v290, 0.5625
    %v339 = vmul.f32 %v291, 0.5625
    %v340 = vmul.f32 %v292, 0.5625
    %v341 = vmul.f32 %v293, 0.5625
    %v342 = vmul.f32 %v294, 0.5625
    %v343 = vmul.f32 %v295, 0.5625
    %v344 = vmul.f32 %v296, 0.5625
    %361 = vrot.lane.b32.xlu0 %v329, 127
    %v362 = vpop.permute.xlu0 %361
    %363 = vrot.lane.b32.xlu0 %v330, 127
    %v364 = vpop.permute.xlu0 %363
    %365 = vrot.lane.b32.xlu0 %v331, 127
    %v366 = vpop.permute.xlu0 %365
    %367 = vrot.lane.b32.xlu0 %v332, 127
    %v368 = vpop.permute.xlu0 %367
    %369 = vrot.lane.b32.xlu0 %v333, 127
    %v370 = vpop.permute.xlu0 %369
    %371 = vrot.lane.b32.xlu0 %v334, 127
    %v372 = vpop.permute.xlu0 %371
    %373 = vrot.lane.b32.xlu0 %v335, 127
    %v374 = vpop.permute.xlu0 %373
    %375 = vrot.lane.b32.xlu0 %v336, 127
    %v376 = vpop.permute.xlu0 %375
    %377 = vrot.lane.b32.xlu0 %v337, 127
    %v378 = vpop.permute.xlu0 %377
    %379 = vrot.lane.b32.xlu0 %v338, 127
    %v380 = vpop.permute.xlu0 %379
    %381 = vrot.lane.b32.xlu0 %v339, 127
    %v382 = vpop.permute.xlu0 %381
    %383 = vrot.lane.b32.xlu0 %v340, 127
    %v384 = vpop.permute.xlu0 %383
    %385 = vrot.lane.b32.xlu0 %v341, 127
    %v386 = vpop.permute.xlu0 %385
    %387 = vrot.lane.b32.xlu0 %v342, 127
    %v388 = vpop.permute.xlu0 %387
    %389 = vrot.lane.b32.xlu0 %v343, 127
    %v390 = vpop.permute.xlu0 %389
    %391 = vrot.lane.b32.xlu0 %v344, 127
    %v392 = vpop.permute.xlu0 %391
    %v409 = vadd.f32 %v313, %v362
    %v410 = vadd.f32 %v314, %v364
    %v411 = vadd.f32 %v315, %v366
    %v412 = vadd.f32 %v316, %v368
    %v413 = vadd.f32 %v317, %v370
    %v414 = vadd.f32 %v318, %v372
    %v415 = vadd.f32 %v319, %v374
    %v416 = vadd.f32 %v320, %v376
    %v417 = vadd.f32 %v321, %v378
    %v418 = vadd.f32 %v322, %v380
    %v419 = vadd.f32 %v323, %v382
    %v420 = vadd.f32 %v324, %v384
    %v421 = vadd.f32 %v325, %v386
    %v422 = vadd.f32 %v326, %v388
    %v423 = vadd.f32 %v327, %v390
    %v424 = vadd.f32 %v328, %v392
    %425 = vrot.lane.b32.xlu0 %v329, 126
    %v426 = vpop.permute.xlu0 %425
    %427 = vrot.lane.b32.xlu0 %v330, 126
    %v428 = vpop.permute.xlu0 %427
    %429 = vrot.lane.b32.xlu0 %v331, 126
    %v430 = vpop.permute.xlu0 %429
    %431 = vrot.lane.b32.xlu0 %v332, 126
    %v432 = vpop.permute.xlu0 %431
    %433 = vrot.lane.b32.xlu0 %v333, 126
    %v434 = vpop.permute.xlu0 %433
    %435 = vrot.lane.b32.xlu0 %v334, 126
    %v436 = vpop.permute.xlu0 %435
    %437 = vrot.lane.b32.xlu0 %v335, 126
    %v438 = vpop.permute.xlu0 %437
    %439 = vrot.lane.b32.xlu0 %v336, 126
    %v440 = vpop.permute.xlu0 %439
    %441 = vrot.lane.b32.xlu0 %v337, 126
    %v442 = vpop.permute.xlu0 %441
    %443 = vrot.lane.b32.xlu0 %v338, 126
    %v444 = vpop.permute.xlu0 %443
    %445 = vrot.lane.b32.xlu0 %v339, 126
    %v446 = vpop.permute.xlu0 %445
    %447 = vrot.lane.b32.xlu0 %v340, 126
    %v448 = vpop.permute.xlu0 %447
    %449 = vrot.lane.b32.xlu0 %v341, 126
    %v450 = vpop.permute.xlu0 %449
    %451 = vrot.lane.b32.xlu0 %v342, 126
    %v452 = vpop.permute.xlu0 %451
    %453 = vrot.lane.b32.xlu0 %v343, 126
    %v454 = vpop.permute.xlu0 %453
    %455 = vrot.lane.b32.xlu0 %v344, 126
    %v456 = vpop.permute.xlu0 %455
    %v473 = vadd.f32 %v409, %v426
    %v474 = vadd.f32 %v410, %v428
    %v475 = vadd.f32 %v411, %v430
    %v476 = vadd.f32 %v412, %v432
    %v477 = vadd.f32 %v413, %v434
    %v478 = vadd.f32 %v414, %v436
    %v479 = vadd.f32 %v415, %v438
    %v480 = vadd.f32 %v416, %v440
    %v481 = vadd.f32 %v417, %v442
    %v482 = vadd.f32 %v418, %v444
    %v483 = vadd.f32 %v419, %v446
    %v484 = vadd.f32 %v420, %v448
    %v485 = vadd.f32 %v421, %v450
    %v486 = vadd.f32 %v422, %v452
    %v487 = vadd.f32 %v423, %v454
    %v488 = vadd.f32 %v424, %v456
    %505 = vrot.lane.b32.xlu0 %v297, 125
    %v506 = vpop.permute.xlu0 %505
    %507 = vrot.lane.b32.xlu0 %v298, 125
    %v508 = vpop.permute.xlu0 %507
    %509 = vrot.lane.b32.xlu0 %v299, 125
    %v510 = vpop.permute.xlu0 %509
    %511 = vrot.lane.b32.xlu0 %v300, 125
    %v512 = vpop.permute.xlu0 %511
    %513 = vrot.lane.b32.xlu0 %v301, 125
    %v514 = vpop.permute.xlu0 %513
    %515 = vrot.lane.b32.xlu0 %v302, 125
    %v516 = vpop.permute.xlu0 %515
    %517 = vrot.lane.b32.xlu0 %v303, 125
    %v518 = vpop.permute.xlu0 %517
    %519 = vrot.lane.b32.xlu0 %v304, 125
    %v520 = vpop.permute.xlu0 %519
    %521 = vrot.lane.b32.xlu0 %v305, 125
    %v522 = vpop.permute.xlu0 %521
    %523 = vrot.lane.b32.xlu0 %v306, 125
    %v524 = vpop.permute.xlu0 %523
    %525 = vrot.lane.b32.xlu0 %v307, 125
    %v526 = vpop.permute.xlu0 %525
    %527 = vrot.lane.b32.xlu0 %v308, 125
    %v528 = vpop.permute.xlu0 %527
    %529 = vrot.lane.b32.xlu0 %v309, 125
    %v530 = vpop.permute.xlu0 %529
    %531 = vrot.lane.b32.xlu0 %v310, 125
    %v532 = vpop.permute.xlu0 %531
    %533 = vrot.lane.b32.xlu0 %v311, 125
    %v534 = vpop.permute.xlu0 %533
    %535 = vrot.lane.b32.xlu0 %v312, 125
    %v536 = vpop.permute.xlu0 %535
    %v553 = vadd.f32 %v473, %v506
    %v554 = vadd.f32 %v474, %v508
    %v555 = vadd.f32 %v475, %v510
    %v556 = vadd.f32 %v476, %v512
    %v557 = vadd.f32 %v477, %v514
    %v558 = vadd.f32 %v478, %v516
    %v559 = vadd.f32 %v479, %v518
    %v560 = vadd.f32 %v480, %v520
    %v561 = vadd.f32 %v481, %v522
    %v562 = vadd.f32 %v482, %v524
    %v563 = vadd.f32 %v483, %v526
    %v564 = vadd.f32 %v484, %v528
    %v565 = vadd.f32 %v485, %v530
    %v566 = vadd.f32 %v486, %v532
    %v567 = vadd.f32 %v487, %v534
    %v568 = vadd.f32 %v488, %v536
    %v569 = vadd.f32 %v297, %v362
    %v570 = vadd.f32 %v298, %v364
    %v571 = vadd.f32 %v299, %v366
    %v572 = vadd.f32 %v300, %v368
    %v573 = vadd.f32 %v301, %v370
    %v574 = vadd.f32 %v302, %v372
    %v575 = vadd.f32 %v303, %v374
    %v576 = vadd.f32 %v304, %v376
    %v577 = vadd.f32 %v305, %v378
    %v578 = vadd.f32 %v306, %v380
    %v579 = vadd.f32 %v307, %v382
    %v580 = vadd.f32 %v308, %v384
    %v581 = vadd.f32 %v309, %v386
    %v582 = vadd.f32 %v310, %v388
    %v583 = vadd.f32 %v311, %v390
    %v584 = vadd.f32 %v312, %v392
    %v585 = vadd.f32 %v569, %v426
    %v586 = vadd.f32 %v570, %v428
    %v587 = vadd.f32 %v571, %v430
    %v588 = vadd.f32 %v572, %v432
    %v589 = vadd.f32 %v573, %v434
    %v590 = vadd.f32 %v574, %v436
    %v591 = vadd.f32 %v575, %v438
    %v592 = vadd.f32 %v576, %v440
    %v593 = vadd.f32 %v577, %v442
    %v594 = vadd.f32 %v578, %v444
    %v595 = vadd.f32 %v579, %v446
    %v596 = vadd.f32 %v580, %v448
    %v597 = vadd.f32 %v581, %v450
    %v598 = vadd.f32 %v582, %v452
    %v599 = vadd.f32 %v583, %v454
    %v600 = vadd.f32 %v584, %v456
    %v601 = vadd.f32 %v585, %v506
    %v602 = vadd.f32 %v586, %v508
    %v603 = vadd.f32 %v587, %v510
    %v604 = vadd.f32 %v588, %v512
    %v605 = vadd.f32 %v589, %v514
    %v606 = vadd.f32 %v590, %v516
    %v607 = vadd.f32 %v591, %v518
    %v608 = vadd.f32 %v592, %v520
    %v609 = vadd.f32 %v593, %v522
    %v610 = vadd.f32 %v594, %v524
    %v611 = vadd.f32 %v595, %v526
    %v612 = vadd.f32 %v596, %v528
    %v613 = vadd.f32 %v597, %v530
    %v614 = vadd.f32 %v598, %v532
    %v615 = vadd.f32 %v599, %v534
    %v616 = vadd.f32 %v600, %v536
    %v617 = vld [vmem:[%s0 + $0x2] sm:$0xff]
    %v618 = vld [vmem:[%s0 + $0xa] sm:$0xff]
    %v619 = vld [vmem:[%s0 + $0x1a] sm:$0xff]
    %v620 = vld [vmem:[%s0 + $0x22] sm:$0xff]
    %v621 = vld [vmem:[%s0 + $0x32] sm:$0xff]
    %v622 = vld [vmem:[%s0 + $0x3a] sm:$0xff]
    %v623 = vld [vmem:[%s0 + $0x4a] sm:$0xff]
    %v624 = vld [vmem:[%s0 + $0x52] sm:$0xff]
    %v625 = vld [vmem:[%s0 + $0x62] sm:$0xff]
    %v626 = vld [vmem:[%s0 + $0x6a] sm:$0xff]
    %v627 = vld [vmem:[%s0 + $0x7a] sm:$0xff]
    %v628 = vld [vmem:[%s0 + $0x82] sm:$0xff]
    %v629 = vld [vmem:[%s0 + $0x92] sm:$0xff]
    %v630 = vld [vmem:[%s0 + $0x9a] sm:$0xff]
    %v631 = vld [vmem:[%s0 + $0xaa] sm:$0xff]
    %v632 = vld [vmem:[%s0 + $0xb2] sm:$0xff]
    %v633 = vmul.f32 %v617, 0.0625
    %v634 = vmul.f32 %v618, 0.0625
    %v635 = vmul.f32 %v619, 0.0625
    %v636 = vmul.f32 %v620, 0.0625
    %v637 = vmul.f32 %v621, 0.0625
    %v638 = vmul.f32 %v622, 0.0625
    %v639 = vmul.f32 %v623, 0.0625
    %v640 = vmul.f32 %v624, 0.0625
    %v641 = vmul.f32 %v625, 0.0625
    %v642 = vmul.f32 %v626, 0.0625
    %v643 = vmul.f32 %v627, 0.0625
    %v644 = vmul.f32 %v628, 0.0625
    %v645 = vmul.f32 %v629, 0.0625
    %v646 = vmul.f32 %v630, 0.0625
    %v647 = vmul.f32 %v631, 0.0625
    %v648 = vmul.f32 %v632, 0.0625
    %v649 = vadd.f32 %v601, %v633
    %v650 = vadd.f32 %v602, %v634
    %v651 = vadd.f32 %v603, %v635
    %v652 = vadd.f32 %v604, %v636
    %v653 = vadd.f32 %v605, %v637
    %v654 = vadd.f32 %v606, %v638
    %v655 = vadd.f32 %v607, %v639
    %v656 = vadd.f32 %v608, %v640
    %v657 = vadd.f32 %v609, %v641
    %v658 = vadd.f32 %v610, %v642
    %v659 = vadd.f32 %v611, %v643
    %v660 = vadd.f32 %v612, %v644
    %v661 = vadd.f32 %v613, %v645
    %v662 = vadd.f32 %v614, %v646
    %v663 = vadd.f32 %v615, %v647
    %v664 = vadd.f32 %v616, %v648
    %v665 = vmul.f32 %v617, 0.1875
    %v666 = vmul.f32 %v618, 0.1875
    %v667 = vmul.f32 %v619, 0.1875
    %v668 = vmul.f32 %v620, 0.1875
    %v669 = vmul.f32 %v621, 0.1875
    %v670 = vmul.f32 %v622, 0.1875
    %v671 = vmul.f32 %v623, 0.1875
    %v672 = vmul.f32 %v624, 0.1875
    %v673 = vmul.f32 %v625, 0.1875
    %v674 = vmul.f32 %v626, 0.1875
    %v675 = vmul.f32 %v627, 0.1875
    %v676 = vmul.f32 %v628, 0.1875
    %v677 = vmul.f32 %v629, 0.1875
    %v678 = vmul.f32 %v630, 0.1875
    %v679 = vmul.f32 %v631, 0.1875
    %v680 = vmul.f32 %v632, 0.1875
    %697 = vrot.lane.b32.xlu0 %v665, 127
    %v698 = vpop.permute.xlu0 %697
    %699 = vrot.lane.b32.xlu0 %v666, 127
    %v700 = vpop.permute.xlu0 %699
    %701 = vrot.lane.b32.xlu0 %v667, 127
    %v702 = vpop.permute.xlu0 %701
    %703 = vrot.lane.b32.xlu0 %v668, 127
    %v704 = vpop.permute.xlu0 %703
    %705 = vrot.lane.b32.xlu0 %v669, 127
    %v706 = vpop.permute.xlu0 %705
    %707 = vrot.lane.b32.xlu0 %v670, 127
    %v708 = vpop.permute.xlu0 %707
    %709 = vrot.lane.b32.xlu0 %v671, 127
    %v710 = vpop.permute.xlu0 %709
    %711 = vrot.lane.b32.xlu0 %v672, 127
    %v712 = vpop.permute.xlu0 %711
    %713 = vrot.lane.b32.xlu0 %v673, 127
    %v714 = vpop.permute.xlu0 %713
    %715 = vrot.lane.b32.xlu0 %v674, 127
    %v716 = vpop.permute.xlu0 %715
    %717 = vrot.lane.b32.xlu0 %v675, 127
    %v718 = vpop.permute.xlu0 %717
    %719 = vrot.lane.b32.xlu0 %v676, 127
    %v720 = vpop.permute.xlu0 %719
    %721 = vrot.lane.b32.xlu0 %v677, 127
    %v722 = vpop.permute.xlu0 %721
    %723 = vrot.lane.b32.xlu0 %v678, 127
    %v724 = vpop.permute.xlu0 %723
    %725 = vrot.lane.b32.xlu0 %v679, 127
    %v726 = vpop.permute.xlu0 %725
    %727 = vrot.lane.b32.xlu0 %v680, 127
    %v728 = vpop.permute.xlu0 %727
    %v745 = vadd.f32 %v649, %v698
    %v746 = vadd.f32 %v650, %v700
    %v747 = vadd.f32 %v651, %v702
    %v748 = vadd.f32 %v652, %v704
    %v749 = vadd.f32 %v653, %v706
    %v750 = vadd.f32 %v654, %v708
    %v751 = vadd.f32 %v655, %v710
    %v752 = vadd.f32 %v656, %v712
    %v753 = vadd.f32 %v657, %v714
    %v754 = vadd.f32 %v658, %v716
    %v755 = vadd.f32 %v659, %v718
    %v756 = vadd.f32 %v660, %v720
    %v757 = vadd.f32 %v661, %v722
    %v758 = vadd.f32 %v662, %v724
    %v759 = vadd.f32 %v663, %v726
    %v760 = vadd.f32 %v664, %v728
    %761 = vrot.lane.b32.xlu0 %v665, 126
    %v762 = vpop.permute.xlu0 %761
    %763 = vrot.lane.b32.xlu0 %v666, 126
    %v764 = vpop.permute.xlu0 %763
    %765 = vrot.lane.b32.xlu0 %v667, 126
    %v766 = vpop.permute.xlu0 %765
    %767 = vrot.lane.b32.xlu0 %v668, 126
    %v768 = vpop.permute.xlu0 %767
    %769 = vrot.lane.b32.xlu0 %v669, 126
    %v770 = vpop.permute.xlu0 %769
    %771 = vrot.lane.b32.xlu0 %v670, 126
    %v772 = vpop.permute.xlu0 %771
    %773 = vrot.lane.b32.xlu0 %v671, 126
    %v774 = vpop.permute.xlu0 %773
    %775 = vrot.lane.b32.xlu0 %v672, 126
    %v776 = vpop.permute.xlu0 %775
    %777 = vrot.lane.b32.xlu0 %v673, 126
    %v778 = vpop.permute.xlu0 %777
    %779 = vrot.lane.b32.xlu0 %v674, 126
    %v780 = vpop.permute.xlu0 %779
    %781 = vrot.lane.b32.xlu0 %v675, 126
    %v782 = vpop.permute.xlu0 %781
    %783 = vrot.lane.b32.xlu0 %v676, 126
    %v784 = vpop.permute.xlu0 %783
    %785 = vrot.lane.b32.xlu0 %v677, 126
    %v786 = vpop.permute.xlu0 %785
    %787 = vrot.lane.b32.xlu0 %v678, 126
    %v788 = vpop.permute.xlu0 %787
    %789 = vrot.lane.b32.xlu0 %v679, 126
    %v790 = vpop.permute.xlu0 %789
    %791 = vrot.lane.b32.xlu0 %v680, 126
    %v792 = vpop.permute.xlu0 %791
    %v809 = vadd.f32 %v745, %v762
    %v810 = vadd.f32 %v746, %v764
    %v811 = vadd.f32 %v747, %v766
    %v812 = vadd.f32 %v748, %v768
    %v813 = vadd.f32 %v749, %v770
    %v814 = vadd.f32 %v750, %v772
    %v815 = vadd.f32 %v751, %v774
    %v816 = vadd.f32 %v752, %v776
    %v817 = vadd.f32 %v753, %v778
    %v818 = vadd.f32 %v754, %v780
    %v819 = vadd.f32 %v755, %v782
    %v820 = vadd.f32 %v756, %v784
    %v821 = vadd.f32 %v757, %v786
    %v822 = vadd.f32 %v758, %v788
    %v823 = vadd.f32 %v759, %v790
    %v824 = vadd.f32 %v760, %v792
    %841 = vrot.lane.b32.xlu0 %v633, 125
    %v842 = vpop.permute.xlu0 %841
    %843 = vrot.lane.b32.xlu0 %v634, 125
    %v844 = vpop.permute.xlu0 %843
    %845 = vrot.lane.b32.xlu0 %v635, 125
    %v846 = vpop.permute.xlu0 %845
    %847 = vrot.lane.b32.xlu0 %v636, 125
    %v848 = vpop.permute.xlu0 %847
    %849 = vrot.lane.b32.xlu0 %v637, 125
    %v850 = vpop.permute.xlu0 %849
    %851 = vrot.lane.b32.xlu0 %v638, 125
    %v852 = vpop.permute.xlu0 %851
    %853 = vrot.lane.b32.xlu0 %v639, 125
    %v854 = vpop.permute.xlu0 %853
    %855 = vrot.lane.b32.xlu0 %v640, 125
    %v856 = vpop.permute.xlu0 %855
    %857 = vrot.lane.b32.xlu0 %v641, 125
    %v858 = vpop.permute.xlu0 %857
    %859 = vrot.lane.b32.xlu0 %v642, 125
    %v860 = vpop.permute.xlu0 %859
    %861 = vrot.lane.b32.xlu0 %v643, 125
    %v862 = vpop.permute.xlu0 %861
    %863 = vrot.lane.b32.xlu0 %v644, 125
    %v864 = vpop.permute.xlu0 %863
    %865 = vrot.lane.b32.xlu0 %v645, 125
    %v866 = vpop.permute.xlu0 %865
    %867 = vrot.lane.b32.xlu0 %v646, 125
    %v868 = vpop.permute.xlu0 %867
    %869 = vrot.lane.b32.xlu0 %v647, 125
    %v870 = vpop.permute.xlu0 %869
    %871 = vrot.lane.b32.xlu0 %v648, 125
    %v872 = vpop.permute.xlu0 %871
    %v889 = vadd.f32 %v809, %v842
    %v890 = vadd.f32 %v810, %v844
    %v891 = vadd.f32 %v811, %v846
    %v892 = vadd.f32 %v812, %v848
    %v893 = vadd.f32 %v813, %v850
    %v894 = vadd.f32 %v814, %v852
    %v895 = vadd.f32 %v815, %v854
    %v896 = vadd.f32 %v816, %v856
    %v897 = vadd.f32 %v817, %v858
    %v898 = vadd.f32 %v818, %v860
    %v899 = vadd.f32 %v819, %v862
    %v900 = vadd.f32 %v820, %v864
    %v901 = vadd.f32 %v821, %v866
    %v902 = vadd.f32 %v822, %v868
    %v903 = vadd.f32 %v823, %v870
    %v904 = vadd.f32 %v824, %v872
    %921 = vrot.lane.b32.xlu0 %v889, 32
    %v922 = vpop.permute.xlu0 %921
    %923 = vrot.lane.b32.xlu0 %v890, 32
    %v924 = vpop.permute.xlu0 %923
    %925 = vrot.lane.b32.xlu0 %v891, 32
    %v926 = vpop.permute.xlu0 %925
    %927 = vrot.lane.b32.xlu0 %v892, 32
    %v928 = vpop.permute.xlu0 %927
    %929 = vrot.lane.b32.xlu0 %v893, 32
    %v930 = vpop.permute.xlu0 %929
    %931 = vrot.lane.b32.xlu0 %v894, 32
    %v932 = vpop.permute.xlu0 %931
    %933 = vrot.lane.b32.xlu0 %v895, 32
    %v934 = vpop.permute.xlu0 %933
    %935 = vrot.lane.b32.xlu0 %v896, 32
    %v936 = vpop.permute.xlu0 %935
    %937 = vrot.lane.b32.xlu0 %v897, 32
    %v938 = vpop.permute.xlu0 %937
    %939 = vrot.lane.b32.xlu0 %v898, 32
    %v940 = vpop.permute.xlu0 %939
    %941 = vrot.lane.b32.xlu0 %v899, 32
    %v942 = vpop.permute.xlu0 %941
    %943 = vrot.lane.b32.xlu0 %v900, 32
    %v944 = vpop.permute.xlu0 %943
    %945 = vrot.lane.b32.xlu0 %v901, 32
    %v946 = vpop.permute.xlu0 %945
    %947 = vrot.lane.b32.xlu0 %v902, 32
    %v948 = vpop.permute.xlu0 %947
    %949 = vrot.lane.b32.xlu0 %v903, 32
    %v950 = vpop.permute.xlu0 %949
    %951 = vrot.lane.b32.xlu0 %v904, 32
    %v952 = vpop.permute.xlu0 %951
    %vm969 = vcmask 261120
    %v970 = vsel %vm969, %v553, %v922
    %v971 = vsel %vm969, %v554, %v924
    %v972 = vsel %vm969, %v555, %v926
    %v973 = vsel %vm969, %v556, %v928
    %v974 = vsel %vm969, %v557, %v930
    %v975 = vsel %vm969, %v558, %v932
    %v976 = vsel %vm969, %v559, %v934
    %v977 = vsel %vm969, %v560, %v936
    %v978 = vsel %vm969, %v561, %v938
    %v979 = vsel %vm969, %v562, %v940
    %v980 = vsel %vm969, %v563, %v942
    %v981 = vsel %vm969, %v564, %v944
    %v982 = vsel %vm969, %v565, %v946
    %v983 = vsel %vm969, %v566, %v948
    %v984 = vsel %vm969, %v567, %v950
    %v985 = vsel %vm969, %v568, %v952
    %vm986 = vcmask 523264
    %987 = vst.msk [vmem:[#allocation2] sm:$0xff] %vm986, %v970
    %988 = vst.msk [vmem:[#allocation2 + $0x8] sm:$0xff] %vm986, %v971
    %989 = vst.msk [vmem:[#allocation2 + $0x10] sm:$0xff] %vm986, %v972
    %990 = vst.msk [vmem:[#allocation2 + $0x18] sm:$0xff] %vm986, %v973
    %991 = vst.msk [vmem:[#allocation2 + $0x20] sm:$0xff] %vm986, %v974
    %992 = vst.msk [vmem:[#allocation2 + $0x28] sm:$0xff] %vm986, %v975
    %993 = vst.msk [vmem:[#allocation2 + $0x30] sm:$0xff] %vm986, %v976
    %994 = vst.msk [vmem:[#allocation2 + $0x38] sm:$0xff] %vm986, %v977
    %995 = vst.msk [vmem:[#allocation2 + $0x40] sm:$0xff] %vm986, %v978
    %996 = vst.msk [vmem:[#allocation2 + $0x48] sm:$0xff] %vm986, %v979
    %997 = vst.msk [vmem:[#allocation2 + $0x50] sm:$0xff] %vm986, %v980
    %998 = vst.msk [vmem:[#allocation2 + $0x58] sm:$0xff] %vm986, %v981
    %999 = vst.msk [vmem:[#allocation2 + $0x60] sm:$0xff] %vm986, %v982
    %1000 = vst.msk [vmem:[#allocation2 + $0x68] sm:$0xff] %vm986, %v983
    %1001 = vst.msk [vmem:[#allocation2 + $0x70] sm:$0xff] %vm986, %v984
    %1002 = vst.msk [vmem:[#allocation2 + $0x78] sm:$0xff] %vm986, %v985
    // Predicated region
    $region6: #{tpu_custom_call.1} parent=1 // pred_check
      _
    $region7: #{tpu_custom_call.1} parent=1 // pred_check_branch
      %1004 = sbr.rel (0) target = $region9
    $region8: #{tpu_custom_call.1} parent=1 // pred_region
      %s1006 = ssub.s32 2048, 2048
      %1007 = vsyncadd [#allocation3], %s1006
      %s1008 = sshll.u32 [#allocation2], 4
      %s1009 = int_to_ptr.vmem [resolvable:$true] %s1008
      %1014 = dma.vmem_to_hbm [thread:$0]  %s1009, 2048, %s1, [#allocation3], 128, 128, 8
    $region9: #{tpu_custom_call.1} parent=1 // pred_fallthru
      _
    // Predicated region
    $region10: #{tpu_custom_call.1} parent=1 // pred_check
      _
    $region11: #{tpu_custom_call.1} parent=1 // pred_check_branch
      %1016 = sbr.rel (0) target = $region13
    $region12: #{tpu_custom_call.1} parent=1 // pred_region
      %1017 = dma.done [#allocation3], 2048
    $region13: #{tpu_custom_call.1} parent=1 // pred_fallthru
      _
    %1018 = vsyncpa [#allocation3], 1

</llo_original>
